<compile_context>
chip_gen: v5e
topology: v5e:2x2
jax: 0.10.0
libtpu: 0.0.40
codegen_flags: <defaults>
</compile_context>

<pallas_src>
import jax
import jax.numpy as jnp
from jax.experimental import pallas as pl
from jax.experimental.pallas import tpu as pltpu


def _pick_tile(n: int) -> int:
    # 256-aligned tiles for v6e/v7x MXU, 128-aligned for v5e, else full extent
    # (block equal to full array dim satisfies the (8,128) rule at small n).
    if n % 256 == 0:
        return 256
    if n % 128 == 0:
        return 128
    return n


def op_sp_node_message_passing(A_dense, X, tar_mask, aggr: str = "sum"):
    """A_dense: (b, n, n), X: (b, n, d), tar_mask: (b, n) bool -> (b, n, d) f32."""
    assert aggr == "sum"  # TODO(synk): 'mean'/'max' aggregation variants not implemented
    b, n, _ = A_dense.shape
    d = X.shape[-1]

    # ---- layout / dtype prep (plain-JAX glue) --------------------------------
    d_pad = max(128, ((d + 127) // 128) * 128)          # lane-dense feature dim
    if d_pad != d:
        X = jnp.pad(X, ((0, 0), (0, 0), (0, d_pad - d)))
    A_bf = A_dense.astype(jnp.bfloat16)                  # bf16 inputs, f32 accumulate
    X_bf = X.astype(jnp.bfloat16)
    mask_f = tar_mask.astype(jnp.float32)[..., None]     # (b, n, 1) 0/1 float

    tm = tk = _pick_tile(n)
    bt = b if n <= 128 else 1                            # fold batch when tiles are tiny
    G, Rm, Rk = b // bt, n // tm, n // tk

    # ---- block-sparsity metadata (scalar-prefetch tables, built eagerly) -----
    nz = jnp.abs(A_dense).reshape(G, bt, Rm, tm, Rk, tk).max(axis=(1, 3, 5)) > 0
    cnt = nz.sum(-1).astype(jnp.int32)                   # (G, Rm) nonzero k-tiles per row-tile
    kmax = int(jnp.maximum(jnp.max(cnt), 1))             # static grid extent on k axis
    order = jnp.argsort(jnp.logical_not(nz), axis=-1)    # nonzero k-tiles first (stable)
    k_ids = order[..., :kmax].astype(jnp.int32)          # (G, Rm, kmax)
    last = jnp.take_along_axis(k_ids, jnp.maximum(cnt - 1, 0)[..., None], axis=-1)
    pos = jnp.arange(kmax, dtype=jnp.int32)
    # pad with the last valid id -> repeated block index -> no extra DMA for padding
    k_ids = jnp.where(pos[None, None, :] < cnt[..., None], k_ids, last)
    k_ids = k_ids.reshape(G * Rm, kmax)                  # flat SMEM tables
    k_cnt = cnt.reshape(G * Rm)

    # ---- kernel ---------------------------------------------------------------
    def kernel(kid_ref, kcnt_ref, a_ref, x_ref, m_ref, o_ref, acc_ref):
        ib, im, s = pl.program_id(0), pl.program_id(1), pl.program_id(2)

        @pl.when(s == 0)
        def _():
            acc_ref[...] = jnp.zeros_like(acc_ref)

        @pl.when(s < kcnt_ref[ib * Rm + im])              # skip padded (empty) k-steps
        def _():
            acc_ref[...] += jnp.einsum(
                "bij,bjd->bid", a_ref[...], x_ref[...],
                preferred_element_type=jnp.float32)

        @pl.when(s == pl.num_programs(2) - 1)
        def _():
            # target-mask fill: single f32 multiply on the f32 accumulator
            o_ref[...] = (acc_ref[...] * m_ref[...]).astype(o_ref.dtype)

    a_map = lambda ib, im, s, kid, kcnt: (ib, im, kid[ib * Rm + im, s])
    x_map = lambda ib, im, s, kid, kcnt: (ib, kid[ib * Rm + im, s], 0)
    m_map = lambda ib, im, s, kid, kcnt: (ib, im, 0)
    o_map = lambda ib, im, s, kid, kcnt: (ib, im, 0)

    out_pad = pl.pallas_call(
        kernel,
        out_shape=jax.ShapeDtypeStruct((b, n, d_pad), jnp.float32),
        grid_spec=pltpu.PrefetchScalarGridSpec(
            num_scalar_prefetch=2,
            grid=(G, Rm, kmax),
            in_specs=[
                pl.BlockSpec((bt, tm, tk), a_map),        # A tile (bf16)
                pl.BlockSpec((bt, tk, d_pad), x_map),     # X tile (bf16, lane-dense)
                pl.BlockSpec((bt, tm, 1), m_map),         # target mask (f32)
            ],
            out_specs=pl.BlockSpec((bt, tm, d_pad), o_map),
            scratch_shapes=[pltpu.VMEM((bt, tm, d_pad), jnp.float32)],
        ),
        compiler_params=pltpu.CompilerParams(
            dimension_semantics=("parallel", "parallel", "arbitrary"),
        ),
    )(k_ids, k_cnt, A_bf, X_bf, mask_f)

    return out_pad[..., :d]


def _densify_coo(edge_batch, edge_src, edge_dst, edge_val, b, n):
    """Plain-JAX glue: scatter COO sparse adjacency into a dense (b, n, n) tensor."""
    A = jnp.zeros((b, n, n), jnp.float32)
    return A.at[edge_batch, edge_src, edge_dst].add(edge_val)


if __name__ == "__main__":
    key = jax.random.PRNGKey(0)
    b, n, d = 2, 16, 32
    nnz = 48  # number of sparse edges over the whole batch

    k1, k2, k3, k4, k5, k6 = jax.random.split(key, 6)

    # Sparse adjacency A (b, n, n) as COO, deterministically sampled
    edge_batch = jax.random.randint(k1, (nnz,), 0, b)
    edge_src = jax.random.randint(k2, (nnz,), 0, n)
    edge_dst = jax.random.randint(k3, (nnz,), 0, n)
    edge_val = jax.random.normal(k4, (nnz,), jnp.float32)
    A_dense = _densify_coo(edge_batch, edge_src, edge_dst, edge_val, b, n)

    # Node features X (b, n, d) and target mask tarX.mask (b, n)
    X = jax.random.normal(k5, (b, n, d), jnp.float32)
    tar_mask = jax.random.uniform(k6, (b, n)) > 0.25

    out = op_sp_node_message_passing(A_dense, X, tar_mask)
    out = jax.block_until_ready(out)

    # Reference (pure JAX) with the same bf16 input rounding, f32 accumulation
    A_ref = A_dense.astype(jnp.bfloat16).astype(jnp.float32)
    X_ref = X.astype(jnp.bfloat16).astype(jnp.float32)
    ref = jnp.einsum("bij,bjd->bid", A_ref, X_ref)
    ref = jnp.where(tar_mask[..., None], ref, 0.0)
    assert jnp.allclose(out, ref, atol=1e-4, rtol=1e-4)

    print("KERNEL_OK")
</pallas_src>

<mosaic_0001>
module attributes {stable_mosaic.version = 11 : i64} {
  func.func @kernel(%arg0: i32, %arg1: i32, %arg2: i32, %arg3: memref<1x1xi32, #tpu.memory_space<smem>>, %arg4: memref<1xi32, #tpu.memory_space<smem>>, %arg5: memref<2x16x16xbf16, #tpu.memory_space<vmem>>, %arg6: memref<2x16x128xbf16, #tpu.memory_space<vmem>>, %arg7: memref<2x16x1xf32, #tpu.memory_space<vmem>>, %arg8: memref<2x16x128xf32, #tpu.memory_space<vmem>>, %arg9: memref<2x16x128xf32, #tpu.memory_space<vmem>>) attributes {dimension_semantics = [#tpu.dimension_semantics<parallel>, #tpu.dimension_semantics<parallel>, #tpu.dimension_semantics<arbitrary>], iteration_bounds = array<i64: 1, 1, 1>, scalar_prefetch = 2 : i64, scratch_operands = 1 : i64, tpu.core_type = #tpu.core_type<tc>, window_params = [{transform_indices = @transform_0, window_bounds = array<i64: 2, 16, 16>}, {transform_indices = @transform_1, window_bounds = array<i64: 2, 16, 128>}, {transform_indices = @transform_2, window_bounds = array<i64: 2, 16, 1>}, {transform_indices = @transform_3, window_bounds = array<i64: 2, 16, 128>}]} {
    %c0_i32 = arith.constant 0 : i32
    %0 = arith.cmpi eq, %arg2, %c0_i32 : i32
    %1 = arith.extui %0 : i1 to i32
    %c0_i32_0 = arith.constant 0 : i32
    %2 = arith.cmpi ne, %1, %c0_i32_0 : i32
    scf.if %2 {
      %cst = arith.constant 0.000000e+00 : f32
      %13 = vector.broadcast %cst : f32 to vector<2x16x128xf32>
      %c0 = arith.constant 0 : index
      %c0_4 = arith.constant 0 : index
      %c0_5 = arith.constant 0 : index
      %14 = vector.load %arg9[%c0, %c0_4, %c0_5] : memref<2x16x128xf32, #tpu.memory_space<vmem>>, vector<2x16x128xf32>
      tpu.vector_store %arg9[%c0, %c0_4, %c0_5], %13 {strides = array<i32>} : memref<2x16x128xf32, #tpu.memory_space<vmem>>, vector<2x16x128xf32>,
    } else {
    }
    %c1_i32 = arith.constant 1 : i32
    %3 = arith.muli %arg0, %c1_i32 : i32
    %4 = arith.addi %3, %arg1 : i32
    %5 = arith.index_cast %4 : i32 to index
    %6 = memref.load %arg4[%5] : memref<1xi32, #tpu.memory_space<smem>>
    %7 = arith.cmpi slt, %arg2, %6 : i32
    %8 = arith.extui %7 : i1 to i32
    %c0_i32_1 = arith.constant 0 : i32
    %9 = arith.cmpi ne, %8, %c0_i32_1 : i32
    scf.if %9 {
      %c0 = arith.constant 0 : index
      %c0_4 = arith.constant 0 : index
      %c0_5 = arith.constant 0 : index
      %13 = vector.load %arg9[%c0, %c0_4, %c0_5] : memref<2x16x128xf32, #tpu.memory_space<vmem>>, vector<2x16x128xf32>
      %c0_6 = arith.constant 0 : index
      %c0_7 = arith.constant 0 : index
      %c0_8 = arith.constant 0 : index
      %14 = vector.load %arg5[%c0_6, %c0_7, %c0_8] : memref<2x16x16xbf16, #tpu.memory_space<vmem>>, vector<2x16x16xbf16>
      %c0_9 = arith.constant 0 : index
      %c0_10 = arith.constant 0 : index
      %c0_11 = arith.constant 0 : index
      %15 = vector.load %arg6[%c0_9, %c0_10, %c0_11] : memref<2x16x128xbf16, #tpu.memory_space<vmem>>, vector<2x16x128xbf16>
      "tpu.trace_start"() <{level = 10 : i32, message = "bij,bjd->bid"}> : () -> ()
      %cst = arith.constant dense<0.000000e+00> : vector<2x16x128xf32>
      %16 = tpu.matmul %14, %15, %cst {dimension_numbers = #tpu.dot_dimension_numbers<[2], [1], [1], [2], [0, 0, 0, 1, 1, 2], [0], [0]>} : vector<2x16x16xbf16>, vector<2x16x128xbf16>, vector<2x16x128xf32> -> vector<2x16x128xf32>
      "tpu.trace_stop"() : () -> ()
      %17 = arith.addf %13, %16 : vector<2x16x128xf32>
      %c0_12 = arith.constant 0 : index
      %c0_13 = arith.constant 0 : index
      %c0_14 = arith.constant 0 : index
      %18 = vector.load %arg9[%c0_12, %c0_13, %c0_14] : memref<2x16x128xf32, #tpu.memory_space<vmem>>, vector<2x16x128xf32>
      tpu.vector_store %arg9[%c0_12, %c0_13, %c0_14], %17 {strides = array<i32>} : memref<2x16x128xf32, #tpu.memory_space<vmem>>, vector<2x16x128xf32>,
    } else {
    }
    %c0_i32_2 = arith.constant 0 : i32
    %10 = arith.cmpi eq, %arg2, %c0_i32_2 : i32
    %11 = arith.extui %10 : i1 to i32
    %c0_i32_3 = arith.constant 0 : i32
    %12 = arith.cmpi ne, %11, %c0_i32_3 : i32
    scf.if %12 {
      %c0 = arith.constant 0 : index
      %c0_4 = arith.constant 0 : index
      %c0_5 = arith.constant 0 : index
      %13 = vector.load %arg9[%c0, %c0_4, %c0_5] : memref<2x16x128xf32, #tpu.memory_space<vmem>>, vector<2x16x128xf32>
      %c0_6 = arith.constant 0 : index
      %c0_7 = arith.constant 0 : index
      %c0_8 = arith.constant 0 : index
      %14 = vector.load %arg7[%c0_6, %c0_7, %c0_8] : memref<2x16x1xf32, #tpu.memory_space<vmem>>, vector<2x16x1xf32>
      %15 = vector.broadcast %14 : vector<2x16x1xf32> to vector<2x16x128xf32>
      %16 = arith.mulf %13, %15 : vector<2x16x128xf32>
      %c0_9 = arith.constant 0 : index
      %c0_10 = arith.constant 0 : index
      %c0_11 = arith.constant 0 : index
      %17 = vector.load %arg8[%c0_9, %c0_10, %c0_11] : memref<2x16x128xf32, #tpu.memory_space<vmem>>, vector<2x16x128xf32>
      tpu.vector_store %arg8[%c0_9, %c0_10, %c0_11], %16 {strides = array<i32>} : memref<2x16x128xf32, #tpu.memory_space<vmem>>, vector<2x16x128xf32>,
    } else {
    }
    return
  }
  func.func @transform_0(%arg0: i32, %arg1: i32, %arg2: i32, %arg3: memref<1x1xi32, #tpu.memory_space<smem>>, %arg4: memref<1xi32, #tpu.memory_space<smem>>) -> (i32, i32, i32) {
    %c1_i32 = arith.constant 1 : i32
    %0 = arith.muli %arg0, %c1_i32 : i32
    %1 = arith.addi %0, %arg1 : i32
    %2 = arith.index_cast %1 : i32 to index
    %3 = arith.index_cast %arg2 : i32 to index
    %4 = memref.load %arg3[%2, %3] : memref<1x1xi32, #tpu.memory_space<smem>>
    %c0_i32 = arith.constant 0 : i32
    return %arg0, %arg1, %4 : i32, i32, i32
  }
  func.func @transform_1(%arg0: i32, %arg1: i32, %arg2: i32, %arg3: memref<1x1xi32, #tpu.memory_space<smem>>, %arg4: memref<1xi32, #tpu.memory_space<smem>>) -> (i32, i32, i32) {
    %c1_i32 = arith.constant 1 : i32
    %0 = arith.muli %arg0, %c1_i32 : i32
    %1 = arith.addi %0, %arg1 : i32
    %2 = arith.index_cast %1 : i32 to index
    %3 = arith.index_cast %arg2 : i32 to index
    %4 = memref.load %arg3[%2, %3] : memref<1x1xi32, #tpu.memory_space<smem>>
    %c0_i32 = arith.constant 0 : i32
    %c0_i32_0 = arith.constant 0 : i32
    return %arg0, %4, %c0_i32 : i32, i32, i32
  }
  func.func @transform_2(%arg0: i32, %arg1: i32, %arg2: i32, %arg3: memref<1x1xi32, #tpu.memory_space<smem>>, %arg4: memref<1xi32, #tpu.memory_space<smem>>) -> (i32, i32, i32) {
    %c0_i32 = arith.constant 0 : i32
    %c0_i32_0 = arith.constant 0 : i32
    return %arg0, %arg1, %c0_i32 : i32, i32, i32
  }
  func.func @transform_3(%arg0: i32, %arg1: i32, %arg2: i32, %arg3: memref<1x1xi32, #tpu.memory_space<smem>>, %arg4: memref<1xi32, #tpu.memory_space<smem>>) -> (i32, i32, i32) {
    %c0_i32 = arith.constant 0 : i32
    %c0_i32_0 = arith.constant 0 : i32
    return %arg0, %arg1, %c0_i32 : i32, i32, i32
  }
}

</mosaic_0001>

<llo_original>
// kernel: tpu_custom_call.1
$region0: #{tpu_custom_call.1}
  #allocation0 [shape = 'u32[]', space=smem, size = 0x4, offset = 0x4, fixed_abs, tag = 'smem constant byte address 0x4 - core index']
  #allocation1 [shape = 'u32[72,128]{1,0:T(1,128)}', space=vmem, size = 0x9000, scoped, tag = 'internal scratch']
  #allocation2 [shape = 'f32[2,16,128]{2,1,0:T(8,128)}', space=vmem, size = 0x4000, scoped, tag = 'scratch operand']
  #allocation3 [shape = 's32[1]{0}', space=sflag, size = 0x4, scoped, tag = 'scoped memory for tpu_custom_call.1']
  #allocation4 [shape = 's32[1,1]{1,0:T(1,128)S(6)}', space=smem, size = 0x200, scoped, tag = 'prefetched SMEM operand 0']
  #allocation5 [shape = 's32[1]{0:T(128)S(6)}', space=smem, size = 0x200, scoped, tag = 'prefetched SMEM operand 1']
  %s0 = inlined_call_operand.<no memory space> [shape: s32[1,1], index: 0, kind: input, shape index: {}]
  %s1 = inlined_call_operand.<no memory space> [shape: s32[1], index: 1, kind: input, shape index: {}]
  %s2 = inlined_call_operand.vmem [shape: bf16[2,16,16], index: 2, kind: input, shape index: {}]
  %s3 = inlined_call_operand.vmem [shape: bf16[2,16,128], index: 3, kind: input, shape index: {}]
  %s4 = inlined_call_operand.vmem [shape: f32[2,16,1], index: 4, kind: input, shape index: {}]
  %s5 = inlined_call_operand.hbm [shape: f32[2,16,128], index: 5, kind: output, shape index: {}]
  %s6 = sld [smem:[#allocation0]]
  $region34: #{tpu_custom_call.1} parent=0
    _
  %s8 = ssub.s32 1, %s6
  %s9 = scalar_select 0, %s8, %s6
  %10 = sst [smem:[#allocation4]] %s0
  %11 = sst [smem:[#allocation5]] %s1
  $region1: #{tpu_custom_call.1} parent=0
    #allocation6 [shape = 'u8[16384]{0}', space=vmem, size = 0x4000, scoped, tag = 'output window, operand 0, single buffered']
    #allocation7 [shape = 's32[1]{0}', space=sflag, size = 0x4, scoped, tag = 'scoped memory for tpu_custom_call.1']
    %12 = vsyncpa [#allocation7], 0
    // Predicated region
    $region2: #{tpu_custom_call.1} parent=1 // pred_check
      _
    $region3: #{tpu_custom_call.1} parent=1 // pred_check_branch
      %14 = sbr.rel (0) target = $region5
    $region4: #{tpu_custom_call.1} parent=1 // pred_region
      %s15 = sadd.s32 0, 0
      %s16 = sadd.s32 0, %s15
      %s17 = smul.u32 %s16, 128
      %s18 = sadd.s32 %s17, 0
      %s19 = sld [smem:[#allocation4 + %s18]]
      %p20 = scmp.lt.s32.totalorder %s19, 0
      %s21 = scalar_select %p20, %s19, 0
      %s22 = smul.addr %s21, 4
      %s23 = scalar_lea.vmem %s2, %s22
      %s24 = sadd.s32 0, 0
      %s25 = sadd.s32 0, %s24
      %s26 = smul.u32 %s25, 128
      %s27 = sadd.s32 %s26, 0
      %s28 = sld [smem:[#allocation4 + %s27]]
    $region5: #{tpu_custom_call.1} parent=1 // pred_fallthru
      _
    // Predicated region
    $region6: #{tpu_custom_call.1} parent=1 // pred_check
      _
    $region7: #{tpu_custom_call.1} parent=1 // pred_check_branch
      %30 = sbr.rel (0) target = $region9
    $region8: #{tpu_custom_call.1} parent=1 // pred_region
      %s31 = sadd.s32 0, 0
      %s32 = sadd.s32 0, %s31
      %s33 = smul.u32 %s32, 128
      %s34 = sadd.s32 %s33, 0
      %s35 = sld [smem:[#allocation4 + %s34]]
      %s36 = smul.u32 2, %s35
      %p37 = scmp.lt.s32.totalorder %s36, 1
      %s38 = scalar_select %p37, %s36, 1
      %s39 = smul.addr %s38, 4
      %s40 = scalar_lea.vmem %s3, %s39
      %s41 = sadd.s32 0, 0
      %s42 = sadd.s32 0, %s41
      %s43 = smul.u32 %s42, 128
      %s44 = sadd.s32 %s43, 0
      %s45 = sld [smem:[#allocation4 + %s44]]
      %s46 = smul.u32 2, %s45
    $region9: #{tpu_custom_call.1} parent=1 // pred_fallthru
      _
    // Predicated region
    $region10: #{tpu_custom_call.1} parent=1 // pred_check
      _
    $region11: #{tpu_custom_call.1} parent=1 // pred_check_branch
      %48 = sbr.rel (0) target = $region13
    $region12: #{tpu_custom_call.1} parent=1 // pred_region
      _
    $region13: #{tpu_custom_call.1} parent=1 // pred_fallthru
      _
    %s49 = sadd.s32 0, 0
    %s50 = sadd.s32 0, %s49
    %s51 = smul.u32 %s50, 128
    %s52 = sadd.s32 %s51, 0
    %s53 = sld [smem:[#allocation4 + %s52]]
    %p54 = scmp.lt.s32.totalorder %s53, 0
    %s55 = scalar_select %p54, %s53, 0
    %s56 = smul.addr %s55, 4
    %s57 = scalar_lea.vmem %s2, %s56
    %s58 = sadd.s32 0, 0
    %s59 = sadd.s32 0, %s58
    %s60 = smul.u32 %s59, 128
    %s61 = sadd.s32 %s60, 0
    %s62 = sld [smem:[#allocation4 + %s61]]
    %s63 = smul.u32 2, %s62
    %p64 = scmp.lt.s32.totalorder %s63, 1
    %s65 = scalar_select %p64, %s63, 1
    %s66 = smul.addr %s65, 4
    %s67 = scalar_lea.vmem %s3, %s66
    %s68 = sadd.s32 0, 0
    %s69 = sadd.s32 0, %s68
    %s70 = smul.u32 %s69, 128
    %s71 = sadd.s32 %s70, 0
    %s72 = sld [smem:[#allocation4 + %s71]]
    %p73 = scmp.lt.s32.totalorder %s72, 0
    %s74 = scalar_select %p73, %s72, 0
    %s75 = smul.addr %s74, 4
    %s76 = scalar_lea.vmem %s2, %s75
    %s77 = sadd.s32 0, 0
    %s78 = sadd.s32 0, %s77
    %s79 = smul.u32 %s78, 128
    %s80 = sadd.s32 %s79, 0
    %s81 = sld [smem:[#allocation4 + %s80]]
    %s82 = sadd.s32 0, 0
    %s83 = sadd.s32 0, %s82
    %s84 = smul.u32 %s83, 128
    %s85 = sadd.s32 %s84, 0
    %s86 = sld [smem:[#allocation4 + %s85]]
    %s87 = smul.u32 2, %s86
    %p88 = scmp.lt.s32.totalorder %s87, 1
    %s89 = scalar_select %p88, %s87, 1
    %s90 = smul.addr %s89, 4
    %s91 = scalar_lea.vmem %s3, %s90
    %s92 = sadd.s32 0, 0
    %s93 = sadd.s32 0, %s92
    %s94 = smul.u32 %s93, 128
    %s95 = sadd.s32 %s94, 0
    %s96 = sld [smem:[#allocation4 + %s95]]
    %s97 = smul.u32 2, %s96
    %p99 = scmp.eq.s32.totalorder 0, 0
    // Predicated region
    $region14: #{tpu_custom_call.1} parent=1 // pred_check
      %p100 = pneg %p99
    $region15: #{tpu_custom_call.1} parent=1 // pred_check_branch
      %102 = sbr.rel (%p100) target = $region17
    $region16: #{tpu_custom_call.1} parent=1 // pred_region
      %103 = vst [vmem:[#allocation2] sm:$0xff] 0.0
      %104 = vst [vmem:[#allocation2 + $0x8] sm:$0xff] 0.0
      %105 = vst [vmem:[#allocation2 + $0x10] sm:$0xff] 0.0
      %106 = vst [vmem:[#allocation2 + $0x18] sm:$0xff] 0.0
    $region17: #{tpu_custom_call.1} parent=1 // pred_fallthru
      _
    %s107 = sadd.s32 0, 0
    %s108 = sld [smem:[#allocation5 + %s107]]
    %p109 = scmp.lt.s32.totalorder 0, %s108
    // Predicated region
    $region18: #{tpu_custom_call.1} parent=1 // pred_check
      %p110 = pneg %p109
    $region19: #{tpu_custom_call.1} parent=1 // pred_check_branch
      %112 = sbr.rel (%p110) target = $region21
    $region20: #{tpu_custom_call.1} parent=1 // pred_region
      %v113 = vld [vmem:[#allocation2] sm:$0xff]
      %v114 = vld [vmem:[#allocation2 + $0x8] sm:$0xff]
      %v115 = vld [vmem:[#allocation2 + $0x10] sm:$0xff]
      %v116 = vld [vmem:[#allocation2 + $0x18] sm:$0xff]
      %v117 = vld [vmem:[%s76] sm:$0xf]
      %v118 = vld [vmem:[%s76 + $0x4] sm:$0xf]
      %v119 = vld [vmem:[%s76 + $0x8] sm:$0xf]
      %v120 = vld [vmem:[%s76 + $0xc] sm:$0xf]
      %v121 = vld [vmem:[%s91] sm:$0xf]
      %v122 = vld [vmem:[%s91 + $0x4] sm:$0xf]
      %v123 = vld [vmem:[%s91 + $0x8] sm:$0xf]
      %v124 = vld [vmem:[%s91 + $0xc] sm:$0xf]
      %v127 = vunpack.c.l.b16 %v117
      %v128 = vunpack.c.l.b16 %v118
      %v129 = vpack.c.b16 %v128, %v127
      %v132 = vunpack.c.l.b16 %v121
      %v133 = vunpack.c.l.b16 %v122
      %v134 = vpack.c.b16 %v133, %v132
      %vm136 = vcmask 130048
      %v138 = vsel %vm136, %v129, 0
      %140 = vmatpush.bf16.msra.mxu0 0
      %141 = vmatpush.bf16.msra.mxu0 0
      %142 = vmatpush.bf16.msra.mxu0 0
      %143 = vmatpush.bf16.msra.mxu0 0
      %144 = vmatpush.bf16.msra.mxu0 0
      %145 = vmatpush.bf16.msra.mxu0 0
      %146 = vmatpush.bf16.msra.mxu0 0
      %147 = vmatpush.bf16.msra.mxu0 %v134
      %148 = vmatmul.bf16.gmra.mxu0 %v138
      %v149 = vpop.f32.mrf.mxu0
      %v150 = vadd.f32 0.0, %v149
      %v151 = vpop.f32.mrf.mxu0
      %v152 = vadd.f32 0.0, %v151
      %153 = vdwg.mxu0
      %v156 = vunpack.c.l.b16 %v119
      %v157 = vunpack.c.l.b16 %v120
      %v158 = vpack.c.b16 %v157, %v156
      %v161 = vunpack.c.l.b16 %v123
      %v162 = vunpack.c.l.b16 %v124
      %v163 = vpack.c.b16 %v162, %v161
      %v166 = vsel %vm136, %v158, 0
      %168 = vmatpush.bf16.msra.mxu0 0
      %169 = vmatpush.bf16.msra.mxu0 0
      %170 = vmatpush.bf16.msra.mxu0 0
      %171 = vmatpush.bf16.msra.mxu0 0
      %172 = vmatpush.bf16.msra.mxu0 0
      %173 = vmatpush.bf16.msra.mxu0 0
      %174 = vmatpush.bf16.msra.mxu0 0
      %175 = vmatpush.bf16.msra.mxu0 %v163
      %176 = vmatmul.bf16.gmra.mxu0 %v166
      %v177 = vpop.f32.mrf.mxu0
      %v178 = vadd.f32 0.0, %v177
      %v179 = vpop.f32.mrf.mxu0
      %v180 = vadd.f32 0.0, %v179
      %181 = vdwg.mxu0
      %v182 = vadd.f32 %v113, %v150
      %v183 = vadd.f32 %v114, %v152
      %v184 = vadd.f32 %v115, %v178
      %v185 = vadd.f32 %v116, %v180
      %186 = vst [vmem:[#allocation2] sm:$0xff] %v182
      %187 = vst [vmem:[#allocation2 + $0x8] sm:$0xff] %v183
      %188 = vst [vmem:[#allocation2 + $0x10] sm:$0xff] %v184
      %189 = vst [vmem:[#allocation2 + $0x18] sm:$0xff] %v185
    $region21: #{tpu_custom_call.1} parent=1 // pred_fallthru
      _
    // Predicated region
    $region22: #{tpu_custom_call.1} parent=1 // pred_check
      %p190 = pneg %p99
    $region23: #{tpu_custom_call.1} parent=1 // pred_check_branch
      %192 = sbr.rel (%p190) target = $region25
    $region24: #{tpu_custom_call.1} parent=1 // pred_region
      %v193 = vld [vmem:[#allocation2] sm:$0xff]
      %v194 = vld [vmem:[#allocation2 + $0x8] sm:$0xff]
      %v195 = vld [vmem:[#allocation2 + $0x10] sm:$0xff]
      %v196 = vld [vmem:[#allocation2 + $0x18] sm:$0xff]
      %v197 = vld [vmem:[%s4] sm:$0xff]
      %v198 = vld [vmem:[%s4 + $0x8] sm:$0xff]
      %v199 = vld [vmem:[%s4 + $0x10] sm:$0xff]
      %v200 = vld [vmem:[%s4 + $0x18] sm:$0xff]
      %202 = vset.pattern.permute.xlu0 0
      %203 = vperm.xlu0 %202, %v197
      %v204 = vpop.permute.xlu0 %203
      %207 = vset.pattern.permute.xlu0 0
      %208 = vperm.xlu0 %207, %v198
      %v209 = vpop.permute.xlu0 %208
      %212 = vset.pattern.permute.xlu0 0
      %213 = vperm.xlu0 %212, %v199
      %v214 = vpop.permute.xlu0 %213
      %217 = vset.pattern.permute.xlu0 0
      %218 = vperm.xlu0 %217, %v200
      %v219 = vpop.permute.xlu0 %218
      %v221 = vmul.f32 %v193, %v204
      %v222 = vmul.f32 %v194, %v209
      %v223 = vmul.f32 %v195, %v214
      %v224 = vmul.f32 %v196, %v219
      %225 = vst [vmem:[#allocation6] sm:$0xff] %v221
      %226 = vst [vmem:[#allocation6 + $0x8] sm:$0xff] %v222
      %227 = vst [vmem:[#allocation6 + $0x10] sm:$0xff] %v223
      %228 = vst [vmem:[#allocation6 + $0x18] sm:$0xff] %v224
    $region25: #{tpu_custom_call.1} parent=1 // pred_fallthru
      _
    // Predicated region
    $region26: #{tpu_custom_call.1} parent=1 // pred_check
      _
    $region27: #{tpu_custom_call.1} parent=1 // pred_check_branch
      %230 = sbr.rel (0) target = $region29
    $region28: #{tpu_custom_call.1} parent=1 // pred_region
      %232 = vsyncadd [#allocation7], 0
      %s233 = sshll.u32 [#allocation6], 4
      %s234 = int_to_ptr.vmem [resolvable:$true] %s233
      %s235 = sshll.u32 %s5, 4
      %s236 = int_to_ptr.hbm [resolvable:$true] %s235
      %241 = dma.vmem_to_hbm [thread:$0]  %s234, 512, %s236, [#allocation7], 128, 128, 8
    $region29: #{tpu_custom_call.1} parent=1 // pred_fallthru
      _
    // Predicated region
    $region30: #{tpu_custom_call.1} parent=1 // pred_check
      _
    $region31: #{tpu_custom_call.1} parent=1 // pred_check_branch
      %243 = sbr.rel (0) target = $region33
    $region32: #{tpu_custom_call.1} parent=1 // pred_region
      %245 = dma.done [#allocation7], 512
    $region33: #{tpu_custom_call.1} parent=1 // pred_fallthru
      _
    %246 = vsyncpa [#allocation7], 1

</llo_original>
